<compile_context>
chip_gen: v5e
topology: v5e:2x2
jax: 0.10.0
libtpu: 0.0.40
codegen_flags: <defaults>
</compile_context>

<pallas_src>
import functools

import jax
import jax.numpy as jnp
from jax.experimental import pallas as pl
from jax.experimental.pallas import tpu as pltpu

LANE = 128


def _round_up(n, m):
    return ((n + m - 1) // m) * m


def _cdiv(a, b):
    return -(-a // b)


# ----------------------------- MADE masks (glue) -----------------------------
def get_mask(in_features, out_features, in_flow_features, mask_type=None):
    if mask_type == 'input':
        in_degrees = jnp.arange(in_features) % in_flow_features
    else:
        in_degrees = jnp.arange(in_features) % (in_flow_features - 1)
    if mask_type == 'output':
        out_degrees = jnp.arange(out_features) % in_flow_features - 1
    else:
        out_degrees = jnp.arange(out_features) % (in_flow_features - 1)
    # shape (out_features, in_features), matches torch nn.Linear weight layout
    return (out_degrees[:, None] >= in_degrees[None, :]).astype(jnp.float32)


# ------------------------------- Pallas kernels --------------------------------
def _made_core(x_ref, w1_ref, b1_ref, w2_ref, b2_ref, w3_ref, b3_ref):
    """Shared fused s/t forward. Returns (u_padded, -sum(a)) in f32."""
    d_pad = x_ref.shape[1]
    h_pad = w1_ref.shape[1] // 2
    cdt = w1_ref.dtype            # MXU operand dtype (bfloat16 default, or float32)

    x = x_ref[...]

    def act(h):
        # first h_pad lanes = s path (tanh), last h_pad lanes = t path (relu);
        # lane-iota select instead of concatenate (no extra (tb, 2*h_pad) copy).
        col = jax.lax.broadcasted_iota(jnp.int32, h.shape, 1)
        return jnp.where(col < h_pad, jnp.tanh(h), jnp.maximum(h, 0.0))

    # ---- fused layer 1: [s_joiner | t_joiner] -> one (d_pad, 2*h_pad) matmul ----
    h = jnp.dot(x.astype(cdt), w1_ref[...],
                preferred_element_type=jnp.float32) + b1_ref[...]
    h = act(h)

    # ---- fused layer 2: block-diagonal (2*h_pad, 2*h_pad) ----
    h = jnp.dot(h.astype(cdt), w2_ref[...],
                preferred_element_type=jnp.float32) + b2_ref[...]
    h = act(h)

    # ---- fused layer 3: block-diagonal (2*h_pad, 2*d_pad) -> [m | a] ----
    out = jnp.dot(h.astype(cdt), w3_ref[...],
                  preferred_element_type=jnp.float32) + b3_ref[...]
    m = out[:, :d_pad]
    a = out[:, d_pad:]

    # padded columns of m/a are exactly 0 -> padded u columns are 0 and sum(a) exact
    u = (x - m) * jnp.exp(-a)
    neg_sum_a = -jnp.sum(a, axis=-1, keepdims=True)
    return u, neg_sum_a


def made_split_kernel_fused_logdet(x_ref, w1_ref, b1_ref, w2_ref, b2_ref,
                                   w3_ref, b3_ref, u_ref, *, num_inputs):
    """D < d_pad: fold -sum(a) into the guaranteed-zero padded column `num_inputs`
    of the u tile, eliminating the separate logdet output/DMA stream."""
    u, neg_sum_a = _made_core(x_ref, w1_ref, b1_ref, w2_ref, b2_ref, w3_ref, b3_ref)
    col = jax.lax.broadcasted_iota(jnp.int32, u.shape, 1)
    u_ref[...] = jnp.where(col == num_inputs, neg_sum_a, u).astype(u_ref.dtype)


def made_split_kernel_split_logdet(x_ref, w1_ref, b1_ref, w2_ref, b2_ref,
                                   w3_ref, b3_ref, u_ref, logdet_ref):
    """D == d_pad corner case: no spare padded column, keep a separate logdet output."""
    u, neg_sum_a = _made_core(x_ref, w1_ref, b1_ref, w2_ref, b2_ref, w3_ref, b3_ref)
    u_ref[...] = u.astype(u_ref.dtype)
    logdet_ref[...] = jnp.broadcast_to(neg_sum_a, logdet_ref.shape)


# ------------------------------ Python wrapper --------------------------------
def made_split_forward(x, packed, *, tb=1024):
    B, D = x.shape
    d_pad = packed['d_pad']
    h_pad = packed['h_pad']
    weights = (packed['w1'], packed['b1'], packed['w2'], packed['b2'],
               packed['w3'], packed['b3'])
    fold_logdet = D < d_pad

    weight_bytes = sum(int(w.size) * w.dtype.itemsize for w in weights)

    def vmem_est(t):
        io = 2 * t * (2 * d_pad) * 4                      # double-buffered x + u tiles
        if not fold_logdet:
            io += 2 * t * LANE * 4                        # separate logdet tile
        interm = t * (2 * h_pad) * 4 * 2 + t * (2 * d_pad) * 4 * 2
        return 2 * weight_bytes + io + interm

    # --- batch tile selection ---------------------------------------------------
    # start from the requested tile, clamp to batch, keep it a multiple of 8,
    # shrink (re-rounding to 8!) until a v7x-safe 40 MiB working set fits.
    b8 = _round_up(B, 8)
    tb = max(8, (min(tb, b8) // 8) * 8)
    while tb > 8 and vmem_est(tb) > (40 << 20):
        tb = max(8, _round_up(tb // 2, 8))

    # split the batch into an even number (>=2 when possible) of equal tiles so
    # dimension_semantics=("parallel",) can shard tiles across v7x's two TensorCores.
    num_tiles = max(_cdiv(b8, tb), 2 if b8 >= 16 else 1)
    if num_tiles > 1 and num_tiles % 2:
        num_tiles += 1
    tb = _round_up(_cdiv(b8, num_tiles), 8)
    b_pad = num_tiles * tb

    vmem_limit = int(min(max(1.25 * vmem_est(tb), 32 << 20), 48 << 20))

    # lane-dense, zero-padded input (padded rows/cols produce finite, discarded output)
    x_p = jnp.zeros((b_pad, d_pad), jnp.float32).at[:B, :D].set(x)

    grid = (num_tiles,)
    in_specs = [pl.BlockSpec((tb, d_pad), lambda i: (i, 0))]
    # weights: constant index_map -> VMEM-resident across the whole grid
    in_specs += [pl.BlockSpec(w.shape, lambda i: (0, 0)) for w in weights]

    compiler_params = pltpu.CompilerParams(
        dimension_semantics=("parallel",),
        vmem_limit_bytes=vmem_limit)

    if fold_logdet:
        u_p = pl.pallas_call(
            functools.partial(made_split_kernel_fused_logdet, num_inputs=D),
            grid=grid,
            in_specs=in_specs,
            out_specs=pl.BlockSpec((tb, d_pad), lambda i: (i, 0)),
            out_shape=jax.ShapeDtypeStruct((b_pad, d_pad), jnp.float32),
            compiler_params=compiler_params,
        )(x_p, *weights)
        return u_p[:B, :D], u_p[:B, D:D + 1]
    else:
        u_p, logdet_p = pl.pallas_call(
            made_split_kernel_split_logdet,
            grid=grid,
            in_specs=in_specs,
            out_specs=(pl.BlockSpec((tb, d_pad), lambda i: (i, 0)),
                       pl.BlockSpec((tb, LANE), lambda i: (i, 0))),
            out_shape=(jax.ShapeDtypeStruct((b_pad, d_pad), jnp.float32),
                       jax.ShapeDtypeStruct((b_pad, LANE), jnp.float32)),
            compiler_params=compiler_params,
        )(x_p, *weights)
        return u_p[:B, :D], logdet_p[:B, :1]


# --------------------------- parameter construction ---------------------------
def init_made_split_params(key, num_inputs, num_hidden):
    """torch nn.Linear-style init; weights pre-masked and transposed to (in, out)."""
    D, H = num_inputs, num_hidden
    input_mask = get_mask(D, H, D, mask_type='input')     # (H, D)
    hidden_mask = get_mask(H, H, D)                       # (H, H)
    output_mask = get_mask(H, D, D, mask_type='output')   # (D, H)

    def linear(k, fan_in, fan_out, mask):
        kw, kb = jax.random.split(k)
        bound = 1.0 / (fan_in ** 0.5)
        w = jax.random.uniform(kw, (fan_out, fan_in), jnp.float32, -bound, bound)
        b = jax.random.uniform(kb, (fan_out,), jnp.float32, -bound, bound)
        return (w * mask).T, b                            # (in, out), (out,)

    keys = jax.random.split(key, 6)
    ws1, bs1 = linear(keys[0], D, H, input_mask)
    ws2, bs2 = linear(keys[1], H, H, hidden_mask)
    ws3, bs3 = linear(keys[2], H, D, output_mask)
    wt1, bt1 = linear(keys[3], D, H, input_mask)
    wt2, bt2 = linear(keys[4], H, H, hidden_mask)
    wt3, bt3 = linear(keys[5], H, D, output_mask)
    return dict(ws1=ws1, bs1=bs1, ws2=ws2, bs2=bs2, ws3=ws3, bs3=bs3,
                wt1=wt1, bt1=bt1, wt2=wt2, bt2=bt2, wt3=wt3, bt3=bt3)


def pack_fused_params(p, num_inputs, num_hidden, weight_dtype=jnp.bfloat16):
    """Fuse s/t paths into 3 lane-dense matrices (layer 1 concatenated,
    layers 2/3 block-diagonal), zero-padded to multiples of 128 lanes.
    Weights default to bf16 (MXU fast path); biases stay f32 (added post-accumulate)."""
    D, H = num_inputs, num_hidden
    d_pad = _round_up(D, LANE)
    h_pad = _round_up(H, LANE)

    w1 = jnp.zeros((d_pad, 2 * h_pad), jnp.float32)
    w1 = w1.at[:D, :H].set(p['ws1']).at[:D, h_pad:h_pad + H].set(p['wt1'])
    b1 = jnp.zeros((1, 2 * h_pad), jnp.float32)
    b1 = b1.at[0, :H].set(p['bs1']).at[0, h_pad:h_pad + H].set(p['bt1'])

    w2 = jnp.zeros((2 * h_pad, 2 * h_pad), jnp.float32)
    w2 = w2.at[:H, :H].set(p['ws2']).at[h_pad:h_pad + H, h_pad:h_pad + H].set(p['wt2'])
    b2 = jnp.zeros((1, 2 * h_pad), jnp.float32)
    b2 = b2.at[0, :H].set(p['bs2']).at[0, h_pad:h_pad + H].set(p['bt2'])

    w3 = jnp.zeros((2 * h_pad, 2 * d_pad), jnp.float32)
    w3 = w3.at[:H, :D].set(p['ws3']).at[h_pad:h_pad + H, d_pad:d_pad + D].set(p['wt3'])
    b3 = jnp.zeros((1, 2 * d_pad), jnp.float32)
    b3 = b3.at[0, :D].set(p['bs3']).at[0, d_pad:d_pad + D].set(p['bt3'])

    return dict(w1=w1.astype(weight_dtype), b1=b1,
                w2=w2.astype(weight_dtype), b2=b2,
                w3=w3.astype(weight_dtype), b3=b3,
                d_pad=d_pad, h_pad=h_pad)


# --------------------------- pure-JAX reference check --------------------------
def made_split_reference(x, p, weight_dtype=jnp.float32):
    def lin(h, w, b):
        return jnp.dot(h.astype(weight_dtype), w.astype(weight_dtype),
                       preferred_element_type=jnp.float32) + b
    h = jnp.tanh(lin(x, p['ws1'], p['bs1']))
    h = jnp.tanh(lin(h, p['ws2'], p['bs2']))
    m = lin(h, p['ws3'], p['bs3'])
    h = jnp.maximum(lin(x, p['wt1'], p['bt1']), 0.0)
    h = jnp.maximum(lin(h, p['wt2'], p['bt2']), 0.0)
    a = lin(h, p['wt3'], p['bt3'])
    u = (x - m) * jnp.exp(-a)
    return u, -jnp.sum(a, axis=-1, keepdims=True)


if __name__ == "__main__":
    B, D, H = 8, 8, 32   # batch, num_inputs, num_hidden (module-scale small shapes)

    key = jax.random.PRNGKey(0)
    k_x, k_p = jax.random.split(key)
    x = jax.random.normal(k_x, (B, D), jnp.float32)
    params = init_made_split_params(k_p, D, H)

    # ---- f32 weights: tight check against the unfused reference ----
    packed_f32 = pack_fused_params(params, D, H, weight_dtype=jnp.float32)
    u, logdet = made_split_forward(x, packed_f32)
    jax.block_until_ready((u, logdet))
    u_ref, ld_ref = made_split_reference(x, params)
    assert u.shape == (B, D) and logdet.shape == (B, 1)
    assert jnp.allclose(u, u_ref, atol=1e-4, rtol=1e-4)
    assert jnp.allclose(logdet, ld_ref, atol=1e-4, rtol=1e-4)

    # ---- bf16 weights (default MXU fast path), f32 accumulation ----
    packed_bf16 = pack_fused_params(params, D, H)
    u_b, ld_b = made_split_forward(x, packed_bf16)
    jax.block_until_ready((u_b, ld_b))
    u_bref, ld_bref = made_split_reference(x, params, weight_dtype=jnp.bfloat16)
    assert jnp.allclose(u_b, u_bref, atol=5e-2, rtol=5e-2)
    assert jnp.allclose(ld_b, ld_bref, atol=5e-2, rtol=5e-2)

    # ---- larger batch exercises the multi-tile (even, megacore-friendly) grid ----
    B2 = 1000
    x2 = jax.random.normal(jax.random.PRNGKey(1), (B2, D), jnp.float32)
    u2, ld2 = made_split_forward(x2, packed_f32)
    jax.block_until_ready((u2, ld2))
    u2_ref, ld2_ref = made_split_reference(x2, params)
    assert jnp.allclose(u2, u2_ref, atol=1e-4, rtol=1e-4)
    assert jnp.allclose(ld2, ld2_ref, atol=1e-4, rtol=1e-4)

    # ---- D == d_pad corner case exercises the separate-logdet-output kernel ----
    B3, D3, H3 = 16, 128, 64
    x3 = jax.random.normal(jax.random.PRNGKey(2), (B3, D3), jnp.float32)
    params3 = init_made_split_params(jax.random.PRNGKey(3), D3, H3)
    packed3 = pack_fused_params(params3, D3, H3, weight_dtype=jnp.float32)
    u3, ld3 = made_split_forward(x3, packed3)
    jax.block_until_ready((u3, ld3))
    u3_ref, ld3_ref = made_split_reference(x3, params3)
    assert jnp.allclose(u3, u3_ref, atol=1e-4, rtol=1e-4)
    assert jnp.allclose(ld3, ld3_ref, atol=1e-3, rtol=1e-4)

    print("KERNEL_OK")
</pallas_src>

<mosaic_0001>
module attributes {stable_mosaic.version = 11 : i64} {
  func.func @made_split_kernel_fused_logdet(%arg0: i32, %arg1: memref<8x128xf32, #tpu.memory_space<vmem>>, %arg2: memref<128x256xf32, #tpu.memory_space<vmem>>, %arg3: memref<1x256xf32, #tpu.memory_space<vmem>>, %arg4: memref<256x256xf32, #tpu.memory_space<vmem>>, %arg5: memref<1x256xf32, #tpu.memory_space<vmem>>, %arg6: memref<256x256xf32, #tpu.memory_space<vmem>>, %arg7: memref<1x256xf32, #tpu.memory_space<vmem>>, %arg8: memref<8x128xf32, #tpu.memory_space<vmem>>) attributes {dimension_semantics = [#tpu.dimension_semantics<parallel>], iteration_bounds = array<i64: 1>, scalar_prefetch = 0 : i64, scratch_operands = 0 : i64, tpu.core_type = #tpu.core_type<tc>, window_params = [{transform_indices = @transform_0, window_bounds = array<i64: 8, 128>}, {pipeline_mode = #tpu.pipeline_mode<synchronous>, transform_indices = @transform_1, window_bounds = array<i64: 128, 256>}, {pipeline_mode = #tpu.pipeline_mode<synchronous>, transform_indices = @transform_2, window_bounds = array<i64: 1, 256>}, {pipeline_mode = #tpu.pipeline_mode<synchronous>, transform_indices = @transform_3, window_bounds = array<i64: 256, 256>}, {pipeline_mode = #tpu.pipeline_mode<synchronous>, transform_indices = @transform_4, window_bounds = array<i64: 1, 256>}, {pipeline_mode = #tpu.pipeline_mode<synchronous>, transform_indices = @transform_5, window_bounds = array<i64: 256, 256>}, {pipeline_mode = #tpu.pipeline_mode<synchronous>, transform_indices = @transform_6, window_bounds = array<i64: 1, 256>}, {transform_indices = @transform_7, window_bounds = array<i64: 8, 128>}]} {
    %c0 = arith.constant 0 : index
    %c0_0 = arith.constant 0 : index
    %0 = vector.load %arg1[%c0, %c0_0] : memref<8x128xf32, #tpu.memory_space<vmem>>, vector<8x128xf32>
    %c0_1 = arith.constant 0 : index
    %c0_2 = arith.constant 0 : index
    %1 = vector.load %arg2[%c0_1, %c0_2] : memref<128x256xf32, #tpu.memory_space<vmem>>, vector<128x256xf32>
    %cst = arith.constant dense<0.000000e+00> : vector<8x256xf32>
    %2 = tpu.matmul %0, %1, %cst {dimension_numbers = #tpu.dot_dimension_numbers<[1], [0], [0], [1], [0, 0, 1, 1], [], []>} : vector<8x128xf32>, vector<128x256xf32>, vector<8x256xf32> -> vector<8x256xf32>
    %c0_3 = arith.constant 0 : index
    %c0_4 = arith.constant 0 : index
    %3 = vector.load %arg3[%c0_3, %c0_4] : memref<1x256xf32, #tpu.memory_space<vmem>>, vector<1x256xf32>
    %4 = vector.broadcast %3 : vector<1x256xf32> to vector<8x256xf32>
    %5 = arith.addf %2, %4 : vector<8x256xf32>
    %6 = tpu.iota {dimensions = array<i32: 1>} : vector<8x256xi32>
    %c128_i32 = arith.constant 128 : i32
    %7 = vector.broadcast %c128_i32 : i32 to vector<8x256xi32>
    %8 = arith.cmpi slt, %6, %7 : vector<8x256xi32>
    %9 = math.tanh %5 : vector<8x256xf32>
    %cst_5 = arith.constant 0.000000e+00 : f32
    %10 = vector.broadcast %cst_5 : f32 to vector<8x256xf32>
    %11 = arith.maximumf %5, %10 : vector<8x256xf32>
    %12 = arith.select %8, %9, %11 : vector<8x256xi1>, vector<8x256xf32>
    %c0_6 = arith.constant 0 : index
    %c0_7 = arith.constant 0 : index
    %13 = vector.load %arg4[%c0_6, %c0_7] : memref<256x256xf32, #tpu.memory_space<vmem>>, vector<256x256xf32>
    %cst_8 = arith.constant dense<0.000000e+00> : vector<8x256xf32>
    %14 = tpu.matmul %12, %13, %cst_8 {dimension_numbers = #tpu.dot_dimension_numbers<[1], [0], [0], [1], [0, 0, 1, 1], [], []>} : vector<8x256xf32>, vector<256x256xf32>, vector<8x256xf32> -> vector<8x256xf32>
    %c0_9 = arith.constant 0 : index
    %c0_10 = arith.constant 0 : index
    %15 = vector.load %arg5[%c0_9, %c0_10] : memref<1x256xf32, #tpu.memory_space<vmem>>, vector<1x256xf32>
    %16 = vector.broadcast %15 : vector<1x256xf32> to vector<8x256xf32>
    %17 = arith.addf %14, %16 : vector<8x256xf32>
    %18 = tpu.iota {dimensions = array<i32: 1>} : vector<8x256xi32>
    %c128_i32_11 = arith.constant 128 : i32
    %19 = vector.broadcast %c128_i32_11 : i32 to vector<8x256xi32>
    %20 = arith.cmpi slt, %18, %19 : vector<8x256xi32>
    %21 = math.tanh %17 : vector<8x256xf32>
    %cst_12 = arith.constant 0.000000e+00 : f32
    %22 = vector.broadcast %cst_12 : f32 to vector<8x256xf32>
    %23 = arith.maximumf %17, %22 : vector<8x256xf32>
    %24 = arith.select %20, %21, %23 : vector<8x256xi1>, vector<8x256xf32>
    %c0_13 = arith.constant 0 : index
    %c0_14 = arith.constant 0 : index
    %25 = vector.load %arg6[%c0_13, %c0_14] : memref<256x256xf32, #tpu.memory_space<vmem>>, vector<256x256xf32>
    %cst_15 = arith.constant dense<0.000000e+00> : vector<8x256xf32>
    %26 = tpu.matmul %24, %25, %cst_15 {dimension_numbers = #tpu.dot_dimension_numbers<[1], [0], [0], [1], [0, 0, 1, 1], [], []>} : vector<8x256xf32>, vector<256x256xf32>, vector<8x256xf32> -> vector<8x256xf32>
    %c0_16 = arith.constant 0 : index
    %c0_17 = arith.constant 0 : index
    %27 = vector.load %arg7[%c0_16, %c0_17] : memref<1x256xf32, #tpu.memory_space<vmem>>, vector<1x256xf32>
    %28 = vector.broadcast %27 : vector<1x256xf32> to vector<8x256xf32>
    %29 = arith.addf %26, %28 : vector<8x256xf32>
    %30 = vector.extract_strided_slice %29 {offsets = [0, 0], sizes = [8, 128], strides = [1, 1]} : vector<8x256xf32> to vector<8x128xf32>
    %31 = vector.extract_strided_slice %29 {offsets = [0, 128], sizes = [8, 128], strides = [1, 1]} : vector<8x256xf32> to vector<8x128xf32>
    %32 = arith.subf %0, %30 : vector<8x128xf32>
    %cst_18 = arith.constant 0.000000e+00 : f32
    %33 = vector.broadcast %cst_18 : f32 to vector<8x128xf32>
    %34 = arith.subf %33, %31 : vector<8x128xf32>
    %35 = math.exp %34 : vector<8x128xf32>
    %36 = arith.mulf %32, %35 : vector<8x128xf32>
    %cst_19 = arith.constant dense<0.000000e+00> : vector<8xf32>
    %37 = vector.multi_reduction <add>, %31, %cst_19 [1] : vector<8x128xf32> to vector<8xf32>
    %38 = vector.shape_cast %37 : vector<8xf32> to vector<8x1xf32>
    %cst_20 = arith.constant 0.000000e+00 : f32
    %39 = vector.broadcast %cst_20 : f32 to vector<8x1xf32>
    %40 = arith.subf %39, %38 : vector<8x1xf32>
    %41 = tpu.iota {dimensions = array<i32: 1>} : vector<8x128xi32>
    %c8_i32 = arith.constant 8 : i32
    %42 = vector.broadcast %c8_i32 : i32 to vector<8x128xi32>
    %43 = arith.cmpi eq, %41, %42 : vector<8x128xi32>
    %44 = vector.shape_cast %40 : vector<8x1xf32> to vector<8x1xf32>
    %45 = vector.broadcast %44 : vector<8x1xf32> to vector<8x128xf32>
    %46 = arith.select %43, %45, %36 : vector<8x128xi1>, vector<8x128xf32>
    %c0_21 = arith.constant 0 : index
    %c0_22 = arith.constant 0 : index
    %47 = vector.load %arg8[%c0_21, %c0_22] : memref<8x128xf32, #tpu.memory_space<vmem>>, vector<8x128xf32>
    tpu.vector_store %arg8[%c0_21, %c0_22], %46 {strides = array<i32>} : memref<8x128xf32, #tpu.memory_space<vmem>>, vector<8x128xf32>,
    return
  }
  func.func @transform_0(%arg0: i32) -> (i32, i32) {
    %c0_i32 = arith.constant 0 : i32
    %c0_i32_0 = arith.constant 0 : i32
    return %arg0, %c0_i32 : i32, i32
  }
  func.func @transform_1(%arg0: i32) -> (i32, i32) {
    %c0_i32 = arith.constant 0 : i32
    %c0_i32_0 = arith.constant 0 : i32
    %c0_i32_1 = arith.constant 0 : i32
    return %c0_i32, %c0_i32_0 : i32, i32
  }
  func.func @transform_2(%arg0: i32) -> (i32, i32) {
    %c0_i32 = arith.constant 0 : i32
    %c0_i32_0 = arith.constant 0 : i32
    %c0_i32_1 = arith.constant 0 : i32
    return %c0_i32, %c0_i32_0 : i32, i32
  }
  func.func @transform_3(%arg0: i32) -> (i32, i32) {
    %c0_i32 = arith.constant 0 : i32
    %c0_i32_0 = arith.constant 0 : i32
    %c0_i32_1 = arith.constant 0 : i32
    return %c0_i32, %c0_i32_0 : i32, i32
  }
  func.func @transform_4(%arg0: i32) -> (i32, i32) {
    %c0_i32 = arith.constant 0 : i32
    %c0_i32_0 = arith.constant 0 : i32
    %c0_i32_1 = arith.constant 0 : i32
    return %c0_i32, %c0_i32_0 : i32, i32
  }
  func.func @transform_5(%arg0: i32) -> (i32, i32) {
    %c0_i32 = arith.constant 0 : i32
    %c0_i32_0 = arith.constant 0 : i32
    %c0_i32_1 = arith.constant 0 : i32
    return %c0_i32, %c0_i32_0 : i32, i32
  }
  func.func @transform_6(%arg0: i32) -> (i32, i32) {
    %c0_i32 = arith.constant 0 : i32
    %c0_i32_0 = arith.constant 0 : i32
    %c0_i32_1 = arith.constant 0 : i32
    return %c0_i32, %c0_i32_0 : i32, i32
  }
  func.func @transform_7(%arg0: i32) -> (i32, i32) {
    %c0_i32 = arith.constant 0 : i32
    %c0_i32_0 = arith.constant 0 : i32
    return %arg0, %c0_i32 : i32, i32
  }
}

</mosaic_0001>

<llo_original>
// kernel: tpu_custom_call.1
$region0: #{tpu_custom_call.1}
  #allocation0 [shape = 'u32[]', space=smem, size = 0x4, offset = 0x4, fixed_abs, tag = 'smem constant byte address 0x4 - core index']
  #allocation1 [shape = 'u32[72,128]{1,0:T(1,128)}', space=vmem, size = 0x9000, scoped, tag = 'internal scratch']
  %s0 = inlined_call_operand.hbm [shape: f32[8,128], index: 0, kind: input, shape index: {}]
  %s1 = inlined_call_operand.hbm [shape: f32[128,256], index: 1, kind: input, shape index: {}]
  %s2 = inlined_call_operand.hbm [shape: f32[1,256], index: 2, kind: input, shape index: {}]
  %s3 = inlined_call_operand.hbm [shape: f32[256,256], index: 3, kind: input, shape index: {}]
  %s4 = inlined_call_operand.vmem [shape: f32[1,256], index: 4, kind: input, shape index: {}]
  %s5 = inlined_call_operand.hbm [shape: f32[256,256], index: 5, kind: input, shape index: {}]
  %s6 = inlined_call_operand.vmem [shape: f32[1,256], index: 6, kind: input, shape index: {}]
  %s7 = inlined_call_operand.hbm [shape: f32[8,128], index: 7, kind: output, shape index: {}]
  %s8 = sld [smem:[#allocation0]]
  $region58: #{tpu_custom_call.1} parent=0
    _
  %s10 = ssub.s32 1, %s8
  %s11 = scalar_select 0, %s10, %s8
  $region1: #{tpu_custom_call.1} parent=0
    #allocation2 [shape = 'u8[4096]{0}', space=vmem, size = 0x1000, scoped, tag = 'input window, operand 0, single buffered']
    #allocation3 [shape = 's32[1]{0}', space=sflag, size = 0x4, scoped, tag = 'scoped memory for tpu_custom_call.1']
    #allocation4 [shape = 's32[1]{0}', space=sflag, size = 0x4, scoped, tag = 'scoped memory for tpu_custom_call.1']
    #allocation5 [shape = 'u8[131072]{0}', space=vmem, size = 0x20000, scoped, tag = 'input window, operand 1, single buffered']
    #allocation6 [shape = 's32[1]{0}', space=sflag, size = 0x4, scoped, tag = 'scoped memory for tpu_custom_call.1']
    #allocation7 [shape = 'u8[1024]{0}', space=vmem, size = 0x400, scoped, tag = 'input window, operand 2, single buffered']
    #allocation8 [shape = 'u8[262144]{0}', space=vmem, size = 0x40000, scoped, tag = 'input window, operand 3, single buffered']
    #allocation9 [shape = 's32[1]{0}', space=sflag, size = 0x4, scoped, tag = 'scoped memory for tpu_custom_call.1']
    #allocation10 [shape = 'u8[262144]{0}', space=vmem, size = 0x40000, scoped, tag = 'input window, operand 5, single buffered']
    #allocation11 [shape = 'u8[4096]{0}', space=vmem, size = 0x1000, scoped, tag = 'output window, operand 0, single buffered']
    %12 = vsyncpa [#allocation3], 0
    %13 = vsyncpa [#allocation6], 0
    %14 = vsyncpa [#allocation9], 0
    %15 = vsyncpa [#allocation4], 0
    // Predicated region
    $region2: #{tpu_custom_call.1} parent=1 // pred_check
      _
    $region3: #{tpu_custom_call.1} parent=1 // pred_check_branch
      %17 = sbr.rel (0) target = $region5
    $region4: #{tpu_custom_call.1} parent=1 // pred_region
      %19 = vsyncadd [#allocation3], 0
      %s21 = sshll.u32 %s0, 4
      %s22 = int_to_ptr.hbm [resolvable:$true] %s21
      %s23 = sshll.u32 [#allocation2], 4
      %s24 = int_to_ptr.vmem [resolvable:$true] %s23
      %26 = dma.hbm_to_vmem [thread:$0]  %s22, 128, %s24, [#allocation3]
    $region5: #{tpu_custom_call.1} parent=1 // pred_fallthru
      _
    // Predicated region
    $region6: #{tpu_custom_call.1} parent=1 // pred_check
      _
    $region7: #{tpu_custom_call.1} parent=1 // pred_check_branch
      %28 = sbr.rel (0) target = $region9
    $region8: #{tpu_custom_call.1} parent=1 // pred_region
      %30 = vsyncadd [#allocation6], 0
      %s31 = sshll.u32 %s1, 4
      %s32 = int_to_ptr.hbm [resolvable:$true] %s31
      %s33 = sshll.u32 [#allocation5], 4
      %s34 = int_to_ptr.vmem [resolvable:$true] %s33
      %39 = dma.hbm_to_vmem [thread:$0]  %s32, 4096, %s34, [#allocation6], 256, 256, 16
    $region9: #{tpu_custom_call.1} parent=1 // pred_fallthru
      _
    // Predicated region
    $region10: #{tpu_custom_call.1} parent=1 // pred_check
      _
    $region11: #{tpu_custom_call.1} parent=1 // pred_check_branch
      %41 = sbr.rel (0) target = $region13
    $region12: #{tpu_custom_call.1} parent=1 // pred_region
      %43 = vsyncadd [#allocation6], 0
      %s45 = sshll.u32 %s2, 4
      %s46 = int_to_ptr.hbm [resolvable:$true] %s45
      %s47 = sshll.u32 [#allocation7], 4
      %s48 = int_to_ptr.vmem [resolvable:$true] %s47
      %50 = dma.hbm_to_vmem [thread:$0]  %s46, 32, %s48, [#allocation6]
    $region13: #{tpu_custom_call.1} parent=1 // pred_fallthru
      _
    // Predicated region
    $region14: #{tpu_custom_call.1} parent=1 // pred_check
      _
    $region15: #{tpu_custom_call.1} parent=1 // pred_check_branch
      %52 = sbr.rel (0) target = $region17
    $region16: #{tpu_custom_call.1} parent=1 // pred_region
      %54 = vsyncadd [#allocation9], 0
      %s55 = sshll.u32 %s3, 4
      %s56 = int_to_ptr.hbm [resolvable:$true] %s55
      %s57 = sshll.u32 [#allocation8], 4
      %s58 = int_to_ptr.vmem [resolvable:$true] %s57
      %63 = dma.hbm_to_vmem [thread:$0]  %s56, 8192, %s58, [#allocation9], 256, 256, 16
    $region17: #{tpu_custom_call.1} parent=1 // pred_fallthru
      _
    // Predicated region
    $region18: #{tpu_custom_call.1} parent=1 // pred_check
      _
    $region19: #{tpu_custom_call.1} parent=1 // pred_check_branch
      %65 = sbr.rel (0) target = $region21
    $region20: #{tpu_custom_call.1} parent=1 // pred_region
      _
    $region21: #{tpu_custom_call.1} parent=1 // pred_fallthru
      _
    // Predicated region
    $region22: #{tpu_custom_call.1} parent=1 // pred_check
      _
    $region23: #{tpu_custom_call.1} parent=1 // pred_check_branch
      %67 = sbr.rel (0) target = $region25
    $region24: #{tpu_custom_call.1} parent=1 // pred_region
      %69 = vsyncadd [#allocation9], 0
      %s70 = sshll.u32 %s5, 4
      %s71 = int_to_ptr.hbm [resolvable:$true] %s70
      %s72 = sshll.u32 [#allocation10], 4
      %s73 = int_to_ptr.vmem [resolvable:$true] %s72
      %78 = dma.hbm_to_vmem [thread:$0]  %s71, 8192, %s73, [#allocation9], 256, 256, 16
    $region25: #{tpu_custom_call.1} parent=1 // pred_fallthru
      _
    // Predicated region
    $region26: #{tpu_custom_call.1} parent=1 // pred_check
      _
    $region27: #{tpu_custom_call.1} parent=1 // pred_check_branch
      %80 = sbr.rel (0) target = $region29
    $region28: #{tpu_custom_call.1} parent=1 // pred_region
      _
    $region29: #{tpu_custom_call.1} parent=1 // pred_fallthru
      _
    // Predicated region
    $region30: #{tpu_custom_call.1} parent=1 // pred_check
      _
    $region31: #{tpu_custom_call.1} parent=1 // pred_check_branch
      %82 = sbr.rel (0) target = $region33
    $region32: #{tpu_custom_call.1} parent=1 // pred_region
      %84 = dma.done [#allocation3], 128
    $region33: #{tpu_custom_call.1} parent=1 // pred_fallthru
      _
    // Predicated region
    $region34: #{tpu_custom_call.1} parent=1 // pred_check
      _
    $region35: #{tpu_custom_call.1} parent=1 // pred_check_branch
      %86 = sbr.rel (0) target = $region37
    $region36: #{tpu_custom_call.1} parent=1 // pred_region
      %88 = dma.done [#allocation6], 4096
    $region37: #{tpu_custom_call.1} parent=1 // pred_fallthru
      _
    // Predicated region
    $region38: #{tpu_custom_call.1} parent=1 // pred_check
      _
    $region39: #{tpu_custom_call.1} parent=1 // pred_check_branch
      %90 = sbr.rel (0) target = $region41
    $region40: #{tpu_custom_call.1} parent=1 // pred_region
      %92 = dma.done [#allocation6], 32
    $region41: #{tpu_custom_call.1} parent=1 // pred_fallthru
      _
    // Predicated region
    $region42: #{tpu_custom_call.1} parent=1 // pred_check
      _
    $region43: #{tpu_custom_call.1} parent=1 // pred_check_branch
      %94 = sbr.rel (0) target = $region45
    $region44: #{tpu_custom_call.1} parent=1 // pred_region
      %96 = dma.done [#allocation9], 8192
    $region45: #{tpu_custom_call.1} parent=1 // pred_fallthru
      _
    // Predicated region
    $region46: #{tpu_custom_call.1} parent=1 // pred_check
      _
    $region47: #{tpu_custom_call.1} parent=1 // pred_check_branch
      %98 = sbr.rel (0) target = $region49
    $region48: #{tpu_custom_call.1} parent=1 // pred_region
      %100 = dma.done [#allocation9], 8192
    $region49: #{tpu_custom_call.1} parent=1 // pred_fallthru
      _
    %v101 = vld [vmem:[#allocation2] sm:$0xff]
    %v102 = vld [vmem:[#allocation5] sm:$0xff]
    %v103 = vld [vmem:[#allocation5 + $0x8] sm:$0xff]
    %v104 = vld [vmem:[#allocation5 + $0x10] sm:$0xff]
    %v105 = vld [vmem:[#allocation5 + $0x18] sm:$0xff]
    %v106 = vld [vmem:[#allocation5 + $0x20] sm:$0xff]
    %v107 = vld [vmem:[#allocation5 + $0x28] sm:$0xff]
    %v108 = vld [vmem:[#allocation5 + $0x30] sm:$0xff]
    %v109 = vld [vmem:[#allocation5 + $0x38] sm:$0xff]
    %v110 = vld [vmem:[#allocation5 + $0x40] sm:$0xff]
    %v111 = vld [vmem:[#allocation5 + $0x48] sm:$0xff]
    %v112 = vld [vmem:[#allocation5 + $0x50] sm:$0xff]
    %v113 = vld [vmem:[#allocation5 + $0x58] sm:$0xff]
    %v114 = vld [vmem:[#allocation5 + $0x60] sm:$0xff]
    %v115 = vld [vmem:[#allocation5 + $0x68] sm:$0xff]
    %v116 = vld [vmem:[#allocation5 + $0x70] sm:$0xff]
    %v117 = vld [vmem:[#allocation5 + $0x78] sm:$0xff]
    %v118 = vld [vmem:[#allocation5 + $0x80] sm:$0xff]
    %v119 = vld [vmem:[#allocation5 + $0x88] sm:$0xff]
    %v120 = vld [vmem:[#allocation5 + $0x90] sm:$0xff]
    %v121 = vld [vmem:[#allocation5 + $0x98] sm:$0xff]
    %v122 = vld [vmem:[#allocation5 + $0xa0] sm:$0xff]
    %v123 = vld [vmem:[#allocation5 + $0xa8] sm:$0xff]
    %v124 = vld [vmem:[#allocation5 + $0xb0] sm:$0xff]
    %v125 = vld [vmem:[#allocation5 + $0xb8] sm:$0xff]
    %v126 = vld [vmem:[#allocation5 + $0xc0] sm:$0xff]
    %v127 = vld [vmem:[#allocation5 + $0xc8] sm:$0xff]
    %v128 = vld [vmem:[#allocation5 + $0xd0] sm:$0xff]
    %v129 = vld [vmem:[#allocation5 + $0xd8] sm:$0xff]
    %v130 = vld [vmem:[#allocation5 + $0xe0] sm:$0xff]
    %v131 = vld [vmem:[#allocation5 + $0xe8] sm:$0xff]
    %v132 = vld [vmem:[#allocation5 + $0xf0] sm:$0xff]
    %v133 = vld [vmem:[#allocation5 + $0xf8] sm:$0xff]
    %v134 = vld [vmem:[#allocation7] sm:$0x3]
    %v136 = vperm.slane %v134, 0
    %v137 = vperm.slane %v134, 1
    %140 = vmatpush.msra.mxu0 %v132
    %141 = vmatpush.msra.mxu0 %v130
    %142 = vmatpush.msra.mxu0 %v128
    %143 = vmatpush.msra.mxu0 %v126
    %144 = vmatpush.msra.mxu0 %v124
    %145 = vmatpush.msra.mxu0 %v122
    %146 = vmatpush.msra.mxu0 %v120
    %147 = vmatpush.msra.mxu0 %v118
    %148 = vmatpush.msra.mxu0 %v116
    %149 = vmatpush.msra.mxu0 %v114
    %150 = vmatpush.msra.mxu0 %v112
    %151 = vmatpush.msra.mxu0 %v110
    %152 = vmatpush.msra.mxu0 %v108
    %153 = vmatpush.msra.mxu0 %v106
    %154 = vmatpush.msra.mxu0 %v104
    %155 = vmatpush.msra.mxu0 %v102
    %156 = vmatmul.f32.gmra.mxu0 %v101
    %v157 = vpop.f32.mrf.mxu0
    %v158 = vadd.f32 %v136, %v157
    %159 = vdwg.mxu0
    %160 = vmatpush.msra.mxu0 %v133
    %161 = vmatpush.msra.mxu0 %v131
    %162 = vmatpush.msra.mxu0 %v129
    %163 = vmatpush.msra.mxu0 %v127
    %164 = vmatpush.msra.mxu0 %v125
    %165 = vmatpush.msra.mxu0 %v123
    %166 = vmatpush.msra.mxu0 %v121
    %167 = vmatpush.msra.mxu0 %v119
    %168 = vmatpush.msra.mxu0 %v117
    %169 = vmatpush.msra.mxu0 %v115
    %170 = vmatpush.msra.mxu0 %v113
    %171 = vmatpush.msra.mxu0 %v111
    %172 = vmatpush.msra.mxu0 %v109
    %173 = vmatpush.msra.mxu0 %v107
    %174 = vmatpush.msra.mxu0 %v105
    %175 = vmatpush.msra.mxu0 %v103
    %176 = vmatmul.f32.gmra.mxu0 %v101
    %v177 = vpop.f32.mrf.mxu0
    %v178 = vadd.f32 %v137, %v177
    %179 = vdwg.mxu0
    %v180 = vlaneseq
    %v181 = vand.u32 %v180, 127
    %v182 = vadd.s32 %v181, 128
    %vm183 = vcmp.lt.s32.totalorder %v181, 128
    %vm184 = vcmp.lt.s32.totalorder %v182, 128
    %v185 = vtanh.pop %v158
    %v186 = vtanh.pop %v178
    %v187 = vmax.f32 %v158, 0.0
    %v188 = vmax.f32 %v178, 0.0
    %v189 = vsel %vm183, %v185, %v187
    %v190 = vsel %vm184, %v186, %v188
    %v191 = vld [vmem:[#allocation8] sm:$0xff]
    %v192 = vld [vmem:[#allocation8 + $0x8] sm:$0xff]
    %v193 = vld [vmem:[#allocation8 + $0x10] sm:$0xff]
    %v194 = vld [vmem:[#allocation8 + $0x18] sm:$0xff]
    %v195 = vld [vmem:[#allocation8 + $0x20] sm:$0xff]
    %v196 = vld [vmem:[#allocation8 + $0x28] sm:$0xff]
    %v197 = vld [vmem:[#allocation8 + $0x30] sm:$0xff]
    %v198 = vld [vmem:[#allocation8 + $0x38] sm:$0xff]
    %v199 = vld [vmem:[#allocation8 + $0x40] sm:$0xff]
    %v200 = vld [vmem:[#allocation8 + $0x48] sm:$0xff]
    %v201 = vld [vmem:[#allocation8 + $0x50] sm:$0xff]
    %v202 = vld [vmem:[#allocation8 + $0x58] sm:$0xff]
    %v203 = vld [vmem:[#allocation8 + $0x60] sm:$0xff]
    %v204 = vld [vmem:[#allocation8 + $0x68] sm:$0xff]
    %v205 = vld [vmem:[#allocation8 + $0x70] sm:$0xff]
    %v206 = vld [vmem:[#allocation8 + $0x78] sm:$0xff]
    %v207 = vld [vmem:[#allocation8 + $0x80] sm:$0xff]
    %v208 = vld [vmem:[#allocation8 + $0x88] sm:$0xff]
    %v209 = vld [vmem:[#allocation8 + $0x90] sm:$0xff]
    %v210 = vld [vmem:[#allocation8 + $0x98] sm:$0xff]
    %v211 = vld [vmem:[#allocation8 + $0xa0] sm:$0xff]
    %v212 = vld [vmem:[#allocation8 + $0xa8] sm:$0xff]
    %v213 = vld [vmem:[#allocation8 + $0xb0] sm:$0xff]
    %v214 = vld [vmem:[#allocation8 + $0xb8] sm:$0xff]
    %v215 = vld [vmem:[#allocation8 + $0xc0] sm:$0xff]
    %v216 = vld [vmem:[#allocation8 + $0xc8] sm:$0xff]
    %v217 = vld [vmem:[#allocation8 + $0xd0] sm:$0xff]
    %v218 = vld [vmem:[#allocation8 + $0xd8] sm:$0xff]
    %v219 = vld [vmem:[#allocation8 + $0xe0] sm:$0xff]
    %v220 = vld [vmem:[#allocation8 + $0xe8] sm:$0xff]
    %v221 = vld [vmem:[#allocation8 + $0xf0] sm:$0xff]
    %v222 = vld [vmem:[#allocation8 + $0xf8] sm:$0xff]
    %v223 = vld [vmem:[#allocation8 + $0x100] sm:$0xff]
    %v224 = vld [vmem:[#allocation8 + $0x108] sm:$0xff]
    %v225 = vld [vmem:[#allocation8 + $0x110] sm:$0xff]
    %v226 = vld [vmem:[#allocation8 + $0x118] sm:$0xff]
    %v227 = vld [vmem:[#allocation8 + $0x120] sm:$0xff]
    %v228 = vld [vmem:[#allocation8 + $0x128] sm:$0xff]
    %v229 = vld [vmem:[#allocation8 + $0x130] sm:$0xff]
    %v230 = vld [vmem:[#allocation8 + $0x138] sm:$0xff]
    %v231 = vld [vmem:[#allocation8 + $0x140] sm:$0xff]
    %v232 = vld [vmem:[#allocation8 + $0x148] sm:$0xff]
    %v233 = vld [vmem:[#allocation8 + $0x150] sm:$0xff]
    %v234 = vld [vmem:[#allocation8 + $0x158] sm:$0xff]
    %v235 = vld [vmem:[#allocation8 + $0x160] sm:$0xff]
    %v236 = vld [vmem:[#allocation8 + $0x168] sm:$0xff]
    %v237 = vld [vmem:[#allocation8 + $0x170] sm:$0xff]
    %v238 = vld [vmem:[#allocation8 + $0x178] sm:$0xff]
    %v239 = vld [vmem:[#allocation8 + $0x180] sm:$0xff]
    %v240 = vld [vmem:[#allocation8 + $0x188] sm:$0xff]
    %v241 = vld [vmem:[#allocation8 + $0x190] sm:$0xff]
    %v242 = vld [vmem:[#allocation8 + $0x198] sm:$0xff]
    %v243 = vld [vmem:[#allocation8 + $0x1a0] sm:$0xff]
    %v244 = vld [vmem:[#allocation8 + $0x1a8] sm:$0xff]
    %v245 = vld [vmem:[#allocation8 + $0x1b0] sm:$0xff]
    %v246 = vld [vmem:[#allocation8 + $0x1b8] sm:$0xff]
    %v247 = vld [vmem:[#allocation8 + $0x1c0] sm:$0xff]
    %v248 = vld [vmem:[#allocation8 + $0x1c8] sm:$0xff]
    %v249 = vld [vmem:[#allocation8 + $0x1d0] sm:$0xff]
    %v250 = vld [vmem:[#allocation8 + $0x1d8] sm:$0xff]
    %v251 = vld [vmem:[#allocation8 + $0x1e0] sm:$0xff]
    %v252 = vld [vmem:[#allocation8 + $0x1e8] sm:$0xff]
    %v253 = vld [vmem:[#allocation8 + $0x1f0] sm:$0xff]
    %v254 = vld [vmem:[#allocation8 + $0x1f8] sm:$0xff]
    %v255 = vld [vmem:[%s4] sm:$0x3]
    %v257 = vperm.slane %v255, 0
    %v258 = vperm.slane %v255, 1
    %261 = vmatpush.msra.mxu0 %v221
    %262 = vmatpush.msra.mxu0 %v219
    %263 = vmatpush.msra.mxu0 %v217
    %264 = vmatpush.msra.mxu0 %v215
    %265 = vmatpush.msra.mxu0 %v213
    %266 = vmatpush.msra.mxu0 %v211
    %267 = vmatpush.msra.mxu0 %v209
    %268 = vmatpush.msra.mxu0 %v207
    %269 = vmatpush.msra.mxu0 %v205
    %270 = vmatpush.msra.mxu0 %v203
    %271 = vmatpush.msra.mxu0 %v201
    %272 = vmatpush.msra.mxu0 %v199
    %273 = vmatpush.msra.mxu0 %v197
    %274 = vmatpush.msra.mxu0 %v195
    %275 = vmatpush.msra.mxu0 %v193
    %276 = vmatpush.msra.mxu0 %v191
    %277 = vmatmul.f32.gmra.mxu0 %v189
    %v278 = vpop.f32.mrf.mxu0
    %v279 = vadd.f32 %v257, %v278
    %280 = vdwg.mxu0
    %281 = vmatpush.msra.mxu0 %v253
    %282 = vmatpush.msra.mxu0 %v251
    %283 = vmatpush.msra.mxu0 %v249
    %284 = vmatpush.msra.mxu0 %v247
    %285 = vmatpush.msra.mxu0 %v245
    %286 = vmatpush.msra.mxu0 %v243
    %287 = vmatpush.msra.mxu0 %v241
    %288 = vmatpush.msra.mxu0 %v239
    %289 = vmatpush.msra.mxu0 %v237
    %290 = vmatpush.msra.mxu0 %v235
    %291 = vmatpush.msra.mxu0 %v233
    %292 = vmatpush.msra.mxu0 %v231
    %293 = vmatpush.msra.mxu0 %v229
    %294 = vmatpush.msra.mxu0 %v227
    %295 = vmatpush.msra.mxu0 %v225
    %296 = vmatpush.msra.mxu0 %v223
    %297 = vmatmul.f32.gmra.mxu0 %v190
    %v298 = vpop.f32.mrf.mxu0
    %v299 = vadd.f32 %v279, %v298
    %300 = vdwg.mxu0
    %301 = vmatpush.msra.mxu0 %v222
    %302 = vmatpush.msra.mxu0 %v220
    %303 = vmatpush.msra.mxu0 %v218
    %304 = vmatpush.msra.mxu0 %v216
    %305 = vmatpush.msra.mxu0 %v214
    %306 = vmatpush.msra.mxu0 %v212
    %307 = vmatpush.msra.mxu0 %v210
    %308 = vmatpush.msra.mxu0 %v208
    %309 = vmatpush.msra.mxu0 %v206
    %310 = vmatpush.msra.mxu0 %v204
    %311 = vmatpush.msra.mxu0 %v202
    %312 = vmatpush.msra.mxu0 %v200
    %313 = vmatpush.msra.mxu0 %v198
    %314 = vmatpush.msra.mxu0 %v196
    %315 = vmatpush.msra.mxu0 %v194
    %316 = vmatpush.msra.mxu0 %v192
    %317 = vmatmul.f32.gmra.mxu0 %v189
    %v318 = vpop.f32.mrf.mxu0
    %v319 = vadd.f32 %v258, %v318
    %320 = vdwg.mxu0
    %321 = vmatpush.msra.mxu0 %v254
    %322 = vmatpush.msra.mxu0 %v252
    %323 = vmatpush.msra.mxu0 %v250
    %324 = vmatpush.msra.mxu0 %v248
    %325 = vmatpush.msra.mxu0 %v246
    %326 = vmatpush.msra.mxu0 %v244
    %327 = vmatpush.msra.mxu0 %v242
    %328 = vmatpush.msra.mxu0 %v240
    %329 = vmatpush.msra.mxu0 %v238
    %330 = vmatpush.msra.mxu0 %v236
    %331 = vmatpush.msra.mxu0 %v234
    %332 = vmatpush.msra.mxu0 %v232
    %333 = vmatpush.msra.mxu0 %v230
    %334 = vmatpush.msra.mxu0 %v228
    %335 = vmatpush.msra.mxu0 %v226
    %336 = vmatpush.msra.mxu0 %v224
    %337 = vmatmul.f32.gmra.mxu0 %v190
    %v338 = vpop.f32.mrf.mxu0
    %v339 = vadd.f32 %v319, %v338
    %340 = vdwg.mxu0
    %v341 = vtanh.pop %v299
    %v342 = vtanh.pop %v339
    %v343 = vmax.f32 %v299, 0.0
    %v344 = vmax.f32 %v339, 0.0
    %v345 = vsel %vm183, %v341, %v343
    %v346 = vsel %vm184, %v342, %v344
    %v347 = vld [vmem:[#allocation10] sm:$0xff]
    %v348 = vld [vmem:[#allocation10 + $0x8] sm:$0xff]
    %v349 = vld [vmem:[#allocation10 + $0x10] sm:$0xff]
    %v350 = vld [vmem:[#allocation10 + $0x18] sm:$0xff]
    %v351 = vld [vmem:[#allocation10 + $0x20] sm:$0xff]
    %v352 = vld [vmem:[#allocation10 + $0x28] sm:$0xff]
    %v353 = vld [vmem:[#allocation10 + $0x30] sm:$0xff]
    %v354 = vld [vmem:[#allocation10 + $0x38] sm:$0xff]
    %v355 = vld [vmem:[#allocation10 + $0x40] sm:$0xff]
    %v356 = vld [vmem:[#allocation10 + $0x48] sm:$0xff]
    %v357 = vld [vmem:[#allocation10 + $0x50] sm:$0xff]
    %v358 = vld [vmem:[#allocation10 + $0x58] sm:$0xff]
    %v359 = vld [vmem:[#allocation10 + $0x60] sm:$0xff]
    %v360 = vld [vmem:[#allocation10 + $0x68] sm:$0xff]
    %v361 = vld [vmem:[#allocation10 + $0x70] sm:$0xff]
    %v362 = vld [vmem:[#allocation10 + $0x78] sm:$0xff]
    %v363 = vld [vmem:[#allocation10 + $0x80] sm:$0xff]
    %v364 = vld [vmem:[#allocation10 + $0x88] sm:$0xff]
    %v365 = vld [vmem:[#allocation10 + $0x90] sm:$0xff]
    %v366 = vld [vmem:[#allocation10 + $0x98] sm:$0xff]
    %v367 = vld [vmem:[#allocation10 + $0xa0] sm:$0xff]
    %v368 = vld [vmem:[#allocation10 + $0xa8] sm:$0xff]
    %v369 = vld [vmem:[#allocation10 + $0xb0] sm:$0xff]
    %v370 = vld [vmem:[#allocation10 + $0xb8] sm:$0xff]
    %v371 = vld [vmem:[#allocation10 + $0xc0] sm:$0xff]
    %v372 = vld [vmem:[#allocation10 + $0xc8] sm:$0xff]
    %v373 = vld [vmem:[#allocation10 + $0xd0] sm:$0xff]
    %v374 = vld [vmem:[#allocation10 + $0xd8] sm:$0xff]
    %v375 = vld [vmem:[#allocation10 + $0xe0] sm:$0xff]
    %v376 = vld [vmem:[#allocation10 + $0xe8] sm:$0xff]
    %v377 = vld [vmem:[#allocation10 + $0xf0] sm:$0xff]
    %v378 = vld [vmem:[#allocation10 + $0xf8] sm:$0xff]
    %v379 = vld [vmem:[#allocation10 + $0x100] sm:$0xff]
    %v380 = vld [vmem:[#allocation10 + $0x108] sm:$0xff]
    %v381 = vld [vmem:[#allocation10 + $0x110] sm:$0xff]
    %v382 = vld [vmem:[#allocation10 + $0x118] sm:$0xff]
    %v383 = vld [vmem:[#allocation10 + $0x120] sm:$0xff]
    %v384 = vld [vmem:[#allocation10 + $0x128] sm:$0xff]
    %v385 = vld [vmem:[#allocation10 + $0x130] sm:$0xff]
    %v386 = vld [vmem:[#allocation10 + $0x138] sm:$0xff]
    %v387 = vld [vmem:[#allocation10 + $0x140] sm:$0xff]
    %v388 = vld [vmem:[#allocation10 + $0x148] sm:$0xff]
    %v389 = vld [vmem:[#allocation10 + $0x150] sm:$0xff]
    %v390 = vld [vmem:[#allocation10 + $0x158] sm:$0xff]
    %v391 = vld [vmem:[#allocation10 + $0x160] sm:$0xff]
    %v392 = vld [vmem:[#allocation10 + $0x168] sm:$0xff]
    %v393 = vld [vmem:[#allocation10 + $0x170] sm:$0xff]
    %v394 = vld [vmem:[#allocation10 + $0x178] sm:$0xff]
    %v395 = vld [vmem:[#allocation10 + $0x180] sm:$0xff]
    %v396 = vld [vmem:[#allocation10 + $0x188] sm:$0xff]
    %v397 = vld [vmem:[#allocation10 + $0x190] sm:$0xff]
    %v398 = vld [vmem:[#allocation10 + $0x198] sm:$0xff]
    %v399 = vld [vmem:[#allocation10 + $0x1a0] sm:$0xff]
    %v400 = vld [vmem:[#allocation10 + $0x1a8] sm:$0xff]
    %v401 = vld [vmem:[#allocation10 + $0x1b0] sm:$0xff]
    %v402 = vld [vmem:[#allocation10 + $0x1b8] sm:$0xff]
    %v403 = vld [vmem:[#allocation10 + $0x1c0] sm:$0xff]
    %v404 = vld [vmem:[#allocation10 + $0x1c8] sm:$0xff]
    %v405 = vld [vmem:[#allocation10 + $0x1d0] sm:$0xff]
    %v406 = vld [vmem:[#allocation10 + $0x1d8] sm:$0xff]
    %v407 = vld [vmem:[#allocation10 + $0x1e0] sm:$0xff]
    %v408 = vld [vmem:[#allocation10 + $0x1e8] sm:$0xff]
    %v409 = vld [vmem:[#allocation10 + $0x1f0] sm:$0xff]
    %v410 = vld [vmem:[#allocation10 + $0x1f8] sm:$0xff]
    %v411 = vld [vmem:[%s6] sm:$0x3]
    %v413 = vperm.slane %v411, 0
    %v414 = vperm.slane %v411, 1
    %417 = vmatpush.msra.mxu0 %v377
    %418 = vmatpush.msra.mxu0 %v375
    %419 = vmatpush.msra.mxu0 %v373
    %420 = vmatpush.msra.mxu0 %v371
    %421 = vmatpush.msra.mxu0 %v369
    %422 = vmatpush.msra.mxu0 %v367
    %423 = vmatpush.msra.mxu0 %v365
    %424 = vmatpush.msra.mxu0 %v363
    %425 = vmatpush.msra.mxu0 %v361
    %426 = vmatpush.msra.mxu0 %v359
    %427 = vmatpush.msra.mxu0 %v357
    %428 = vmatpush.msra.mxu0 %v355
    %429 = vmatpush.msra.mxu0 %v353
    %430 = vmatpush.msra.mxu0 %v351
    %431 = vmatpush.msra.mxu0 %v349
    %432 = vmatpush.msra.mxu0 %v347
    %433 = vmatmul.f32.gmra.mxu0 %v345
    %v434 = vpop.f32.mrf.mxu0
    %v435 = vadd.f32 %v413, %v434
    %436 = vdwg.mxu0
    %437 = vmatpush.msra.mxu0 %v409
    %438 = vmatpush.msra.mxu0 %v407
    %439 = vmatpush.msra.mxu0 %v405
    %440 = vmatpush.msra.mxu0 %v403
    %441 = vmatpush.msra.mxu0 %v401
    %442 = vmatpush.msra.mxu0 %v399
    %443 = vmatpush.msra.mxu0 %v397
    %444 = vmatpush.msra.mxu0 %v395
    %445 = vmatpush.msra.mxu0 %v393
    %446 = vmatpush.msra.mxu0 %v391
    %447 = vmatpush.msra.mxu0 %v389
    %448 = vmatpush.msra.mxu0 %v387
    %449 = vmatpush.msra.mxu0 %v385
    %450 = vmatpush.msra.mxu0 %v383
    %451 = vmatpush.msra.mxu0 %v381
    %452 = vmatpush.msra.mxu0 %v379
    %453 = vmatmul.f32.gmra.mxu0 %v346
    %v454 = vpop.f32.mrf.mxu0
    %v455 = vadd.f32 %v435, %v454
    %456 = vdwg.mxu0
    %457 = vmatpush.msra.mxu0 %v378
    %458 = vmatpush.msra.mxu0 %v376
    %459 = vmatpush.msra.mxu0 %v374
    %460 = vmatpush.msra.mxu0 %v372
    %461 = vmatpush.msra.mxu0 %v370
    %462 = vmatpush.msra.mxu0 %v368
    %463 = vmatpush.msra.mxu0 %v366
    %464 = vmatpush.msra.mxu0 %v364
    %465 = vmatpush.msra.mxu0 %v362
    %466 = vmatpush.msra.mxu0 %v360
    %467 = vmatpush.msra.mxu0 %v358
    %468 = vmatpush.msra.mxu0 %v356
    %469 = vmatpush.msra.mxu0 %v354
    %470 = vmatpush.msra.mxu0 %v352
    %471 = vmatpush.msra.mxu0 %v350
    %472 = vmatpush.msra.mxu0 %v348
    %473 = vmatmul.f32.gmra.mxu0 %v345
    %v474 = vpop.f32.mrf.mxu0
    %v475 = vadd.f32 %v414, %v474
    %476 = vdwg.mxu0
    %477 = vmatpush.msra.mxu0 %v410
    %478 = vmatpush.msra.mxu0 %v408
    %479 = vmatpush.msra.mxu0 %v406
    %480 = vmatpush.msra.mxu0 %v404
    %481 = vmatpush.msra.mxu0 %v402
    %482 = vmatpush.msra.mxu0 %v400
    %483 = vmatpush.msra.mxu0 %v398
    %484 = vmatpush.msra.mxu0 %v396
    %485 = vmatpush.msra.mxu0 %v394
    %486 = vmatpush.msra.mxu0 %v392
    %487 = vmatpush.msra.mxu0 %v390
    %488 = vmatpush.msra.mxu0 %v388
    %489 = vmatpush.msra.mxu0 %v386
    %490 = vmatpush.msra.mxu0 %v384
    %491 = vmatpush.msra.mxu0 %v382
    %492 = vmatpush.msra.mxu0 %v380
    %493 = vmatmul.f32.gmra.mxu0 %v346
    %v494 = vpop.f32.mrf.mxu0
    %v495 = vadd.f32 %v475, %v494
    %496 = vdwg.mxu0
    %v497 = vsub.f32 %v101, %v455
    %v498 = vsub.f32 0.0, %v495
    %v499 = vmul.f32 %v498, 1.442695
    %v500 = vpow.pop %v499
    %v501 = vmul.f32 %v497, %v500
    %502 = vadd.xlane.f32.xlu0 %v495
    %v503 = vpop.xlane.xlu0 %502
    %v504 = vsub.f32 0.0, %v503
    %vm505 = vcmp.eq.s32.totalorder %v181, 8
    %v506 = vsel %vm505, %v504, %v501
    %507 = vst [vmem:[#allocation11] sm:$0xff] %v506
    // Predicated region
    $region50: #{tpu_custom_call.1} parent=1 // pred_check
      _
    $region51: #{tpu_custom_call.1} parent=1 // pred_check_branch
      %509 = sbr.rel (0) target = $region53
    $region52: #{tpu_custom_call.1} parent=1 // pred_region
      %511 = vsyncadd [#allocation4], 0
      %s513 = sshll.u32 [#allocation11], 4
      %s514 = int_to_ptr.vmem [resolvable:$true] %s513
      %s515 = sshll.u32 %s7, 4
      %s516 = int_to_ptr.hbm [resolvable:$true] %s515
      %518 = dma.vmem_to_hbm [thread:$0]  %s514, 128, %s516, [#allocation4]
    $region53: #{tpu_custom_call.1} parent=1 // pred_fallthru
      _
    // Predicated region
    $region54: #{tpu_custom_call.1} parent=1 // pred_check
      _
    $region55: #{tpu_custom_call.1} parent=1 // pred_check_branch
      %520 = sbr.rel (0) target = $region57
    $region56: #{tpu_custom_call.1} parent=1 // pred_region
      %522 = dma.done [#allocation4], 128
    $region57: #{tpu_custom_call.1} parent=1 // pred_fallthru
      _
    %523 = vsyncpa [#allocation3], 1
    %524 = vsyncpa [#allocation6], 1
    %525 = vsyncpa [#allocation9], 1
    %526 = vsyncpa [#allocation4], 1

</llo_original>
